<compile_context>
chip_gen: v7x
topology: tpu7x:2x2x1
jax: 0.10.0
libtpu: 0.0.40
codegen_flags: <defaults>
</compile_context>

<pallas_src>
import jax
import jax.numpy as jnp
from jax.experimental import pallas as pl
from jax.experimental.pallas import tpu as pltpu


def _gemv_out1_kernel(x_ref, w_ref, b_ref, o_ref):
    """D_out == 1: VPU broadcast-multiply + XLU lane reduce, f32 accumulation.

    x_ref: (rows, D_in) VMEM, w_ref: (1, D_in) VMEM, b_ref: (1, 1) VMEM,
    o_ref: (rows, 1) VMEM.
    """
    prod = x_ref[...].astype(jnp.float32) * w_ref[...].astype(jnp.float32)
    # keepdims=True: batch results stay one-per-sublane, stored straight to the
    # (rows, 1) output block -- no vxpose, no rank-1 intermediate.
    s = jnp.sum(prod, axis=1, keepdims=True)                      # (rows, 1) f32
    o_ref[...] = (s + b_ref[...].astype(jnp.float32)).astype(o_ref.dtype)


def _linear_kernel(x_ref, w_ref, b_ref, o_ref):
    """General D_out: MXU dot contracting on the last dims (weight kept in its
    native (D_out, D_in) layout), f32 accumulation, bias added in f32."""
    acc = jax.lax.dot_general(
        x_ref[...], w_ref[...],
        dimension_numbers=(((1,), (1,)), ((), ())),
        preferred_element_type=jnp.float32)                       # (rows, D_out)
    o_ref[...] = (acc + b_ref[...].astype(jnp.float32)).astype(o_ref.dtype)


def text_classifier_reg(x, weight, bias, *, tm=512):
    """x: (B, D_in), weight: (D_out, D_in), bias: (D_out,) -> (B, D_out)."""
    B, D_in = x.shape
    D_out = weight.shape[0]

    # Batch-parallel grid only when it can pay for itself (>= 2 full row tiles);
    # otherwise a single whole-array invocation (fixed-overhead bound).
    use_grid = (B % tm == 0) and (B // tm >= 2)
    parallel = pltpu.CompilerParams(dimension_semantics=("parallel",))

    if D_out == 1:
        b2 = bias.reshape(1, 1)
        if use_grid:
            return pl.pallas_call(
                _gemv_out1_kernel,
                out_shape=jax.ShapeDtypeStruct((B, 1), x.dtype),
                grid=(B // tm,),
                in_specs=[
                    pl.BlockSpec((tm, D_in), lambda i: (i, 0)),   # x row tile
                    pl.BlockSpec((1, D_in), lambda i: (0, 0)),    # weight (replicated)
                    pl.BlockSpec((1, 1), lambda i: (0, 0)),       # bias (replicated)
                ],
                out_specs=pl.BlockSpec((tm, 1), lambda i: (i, 0)),
                compiler_params=parallel,
            )(x, weight, b2)
        return pl.pallas_call(
            _gemv_out1_kernel,
            out_shape=jax.ShapeDtypeStruct((B, 1), x.dtype),
            in_specs=[pl.BlockSpec(memory_space=pltpu.MemorySpace.VMEM)] * 3,
            out_specs=pl.BlockSpec(memory_space=pltpu.MemorySpace.VMEM),
        )(x, weight, b2)

    # General D_out path.
    b2 = bias.reshape(1, D_out)
    if use_grid:
        return pl.pallas_call(
            _linear_kernel,
            out_shape=jax.ShapeDtypeStruct((B, D_out), x.dtype),
            grid=(B // tm,),
            in_specs=[
                pl.BlockSpec((tm, D_in), lambda i: (i, 0)),       # x row tile
                pl.BlockSpec((D_out, D_in), lambda i: (0, 0)),    # weight (replicated)
                pl.BlockSpec((1, D_out), lambda i: (0, 0)),       # bias (replicated)
            ],
            out_specs=pl.BlockSpec((tm, D_out), lambda i: (i, 0)),
            compiler_params=parallel,
        )(x, weight, b2)
    return pl.pallas_call(
        _linear_kernel,
        out_shape=jax.ShapeDtypeStruct((B, D_out), x.dtype),
        in_specs=[pl.BlockSpec(memory_space=pltpu.MemorySpace.VMEM)] * 3,
        out_specs=pl.BlockSpec(memory_space=pltpu.MemorySpace.VMEM),
    )(x, weight, b2)


def _make_params(key, d_in, d_out, dtype=jnp.float32):
    """nn.Linear-style deterministic init (uniform +-1/sqrt(fan_in))."""
    k_w, k_b = jax.random.split(key)
    bound = 1.0 / jnp.sqrt(d_in)
    w = jax.random.uniform(k_w, (d_out, d_in), minval=-bound, maxval=bound, dtype=dtype)
    b = jax.random.uniform(k_b, (d_out,), minval=-bound, maxval=bound, dtype=dtype)
    return w, b


def _check(x, w, b):
    out = text_classifier_reg(x, w, b)
    jax.block_until_ready(out)
    ref = x @ w.T + b
    assert out.shape == ref.shape, (out.shape, ref.shape)
    assert jnp.allclose(out, ref, atol=1e-5, rtol=1e-5), float(jnp.max(jnp.abs(out - ref)))


if __name__ == "__main__":
    key = jax.random.PRNGKey(0)
    k1, k2, k3, k4, kp1, kp2, kp3, kp4 = jax.random.split(key, 8)

    # 1) Module-default small shape: D_out == 1, single whole-array invocation.
    x = jax.random.normal(k1, (8, 32), dtype=jnp.float32)
    w, b = _make_params(kp1, 32, 1)
    _check(x, w, b)

    # 2) D_out == 1, batch-tiled "parallel" grid path (2 row tiles of 512).
    x = jax.random.normal(k2, (1024, 256), dtype=jnp.float32)
    w, b = _make_params(kp2, 256, 1)
    _check(x, w, b)

    # 3) General D_out, small whole-array MXU path.
    x = jax.random.normal(k3, (8, 32), dtype=jnp.float32)
    w, b = _make_params(kp3, 32, 4)
    _check(x, w, b)

    # 4) General D_out, batch-tiled "parallel" grid path.
    x = jax.random.normal(k4, (1024, 256), dtype=jnp.float32)
    w, b = _make_params(kp4, 256, 8)
    _check(x, w, b)

    print("KERNEL_OK")
</pallas_src>

<mosaic_0001>
module attributes {stable_mosaic.version = 11 : i64} {
  func.func @_gemv_out1_kernel(%arg0: memref<8x32xf32, #tpu.memory_space<vmem>>, %arg1: memref<1x32xf32, #tpu.memory_space<vmem>>, %arg2: memref<1x1xf32, #tpu.memory_space<vmem>>, %arg3: memref<8x1xf32, #tpu.memory_space<vmem>>) attributes {dimension_semantics = [], scalar_prefetch = 0 : i64, scratch_operands = 0 : i64, tpu.core_type = #tpu.core_type<tc>} {
    %c0 = arith.constant 0 : index
    %c0_0 = arith.constant 0 : index
    %0 = vector.load %arg0[%c0, %c0_0] : memref<8x32xf32, #tpu.memory_space<vmem>>, vector<8x32xf32>
    %c0_1 = arith.constant 0 : index
    %c0_2 = arith.constant 0 : index
    %1 = vector.load %arg1[%c0_1, %c0_2] : memref<1x32xf32, #tpu.memory_space<vmem>>, vector<1x32xf32>
    %2 = vector.broadcast %1 : vector<1x32xf32> to vector<8x32xf32>
    %3 = arith.mulf %0, %2 : vector<8x32xf32>
    %cst = arith.constant dense<0.000000e+00> : vector<8xf32>
    %4 = vector.multi_reduction <add>, %3, %cst [1] : vector<8x32xf32> to vector<8xf32>
    %5 = vector.shape_cast %4 : vector<8xf32> to vector<8x1xf32>
    %c0_3 = arith.constant 0 : index
    %c0_4 = arith.constant 0 : index
    %6 = vector.load %arg2[%c0_3, %c0_4] : memref<1x1xf32, #tpu.memory_space<vmem>>, vector<1x1xf32>
    %7 = vector.broadcast %6 : vector<1x1xf32> to vector<8x1xf32>
    %8 = arith.addf %5, %7 : vector<8x1xf32>
    %c0_5 = arith.constant 0 : index
    %c0_6 = arith.constant 0 : index
    %9 = vector.load %arg3[%c0_5, %c0_6] : memref<8x1xf32, #tpu.memory_space<vmem>>, vector<8x1xf32>
    tpu.vector_store %arg3[%c0_5, %c0_6], %8 {strides = array<i32>} : memref<8x1xf32, #tpu.memory_space<vmem>>, vector<8x1xf32>,
    return
  }
}

</mosaic_0001>

<llo_original>
// kernel: tpu_custom_call.1
$region0: #{tpu_custom_call.1}
  #allocation0 [shape = 'u32[]', space=smem, size = 0x4, offset = 0x4, fixed_abs, tag = 'smem constant byte address 0x4 - core index']
  #allocation1 [shape = 'u32[144,128]{1,0:T(1,128)}', space=vmem, size = 0x12000, scoped, tag = 'internal scratch']
  #allocation2 [shape = 'f32[1,1]{1,0:T(1,128)S(1)}', space=vmem, size = 0x200, scoped, tag = 'scoped memory for tpu_custom_call.1']
  %s0 = inlined_call_operand.hbm [shape: f32[8,32], index: 0, kind: input, shape index: {}]
  %s1 = inlined_call_operand.vmem [shape: f32[1,32], index: 1, kind: input, shape index: {}]
  %s2 = inlined_call_operand.<no memory space> [shape: f32[1,1], index: 2, kind: input, shape index: {}]
  %s3 = inlined_call_operand.vmem [shape: f32[8,1], index: 3, kind: output, shape index: {}]
  %s4 = sld [smem:[#allocation0]]
  $region26: #{tpu_custom_call.1} parent=0
    _
  %s6 = ssub.s32 1, %s4
  %s7 = scalar_select 0, %s6, %s4
  %v8 = vstv %s2
  %9 = vst [vmem:[#allocation2] sm:$0x1] %v8
  $region1: #{tpu_custom_call.1} parent=0
    #allocation3 [shape = 'u8[4096]{0}', space=vmem, size = 0x1000, scoped, tag = 'input window, operand 0, single buffered']
    #allocation4 [shape = 's32[1]{0}', space=sflag, size = 0x4, scoped, tag = 'scoped memory for tpu_custom_call.1']
    %10 = vsyncpa [#allocation4], 0
    // Predicated region
    $region2: #{tpu_custom_call.1} parent=1 // pred_check
      _
    $region3: #{tpu_custom_call.1} parent=1 // pred_check_branch
      %12 = sbr.rel (0) target = $region5
    $region4: #{tpu_custom_call.1} parent=1 // pred_region
      %s14 = ssub.s32 128, 128
      %15 = vsyncadd [#allocation4], %s14
      %s17 = sshll.u32 [#allocation3], 4
      %s18 = int_to_ptr.vmem [resolvable:$true] %s17
      %20 = dma.hbm_to_vmem [thread:$0]  %s0, 128, %s18, [#allocation4]
    $region5: #{tpu_custom_call.1} parent=1 // pred_fallthru
      _
    // Predicated region
    $region6: #{tpu_custom_call.1} parent=1 // pred_check
      _
    $region7: #{tpu_custom_call.1} parent=1 // pred_check_branch
      %22 = sbr.rel (0) target = $region9
    $region8: #{tpu_custom_call.1} parent=1 // pred_region
      _
    $region9: #{tpu_custom_call.1} parent=1 // pred_fallthru
      _
    // Predicated region
    $region10: #{tpu_custom_call.1} parent=1 // pred_check
      _
    $region11: #{tpu_custom_call.1} parent=1 // pred_check_branch
      %24 = sbr.rel (0) target = $region13
    $region12: #{tpu_custom_call.1} parent=1 // pred_region
      _
    $region13: #{tpu_custom_call.1} parent=1 // pred_fallthru
      _
    // Predicated region
    $region14: #{tpu_custom_call.1} parent=1 // pred_check
      _
    $region15: #{tpu_custom_call.1} parent=1 // pred_check_branch
      %26 = sbr.rel (0) target = $region17
    $region16: #{tpu_custom_call.1} parent=1 // pred_region
      %27 = dma.done [#allocation4], 128
    $region17: #{tpu_custom_call.1} parent=1 // pred_fallthru
      _
    %v28 = vld [vmem:[#allocation3] sm:$0xff]
    %v29 = vld [vmem:[%s1] sm:$0x1]
    %v31 = vlaneseq
    %v32 = vshrl.u32 %v31, 7
    %v33 = vsub.s32 0, %v32
    %v34 = vrot.slane %v29, %v33
    %v36 = vmul.f32 %v28, %v34
    %vm37 = vcmask 261120
    %v38 = vsel %vm37, %v36, 0.0
    %39 = vadd.xlane.f32.xlu0 %v38
    %v40 = vpop.xlane.xlu0 %39
    %v41 = vld [vmem:[#allocation2] sm:$0x1]
    %v43 = vlaneseq
    %v44 = vshrl.u32 %v43, 7
    %v45 = vsub.s32 0, %v44
    %v46 = vrot.slane %v41, %v45
    %v48 = vadd.f32 %v40, %v46
    %vm49 = vcmask 7168
    %50 = vst.msk [vmem:[%s3] sm:$0xff] %vm49, %v48
    // Predicated region
    $region18: #{tpu_custom_call.1} parent=1 // pred_check
      _
    $region19: #{tpu_custom_call.1} parent=1 // pred_check_branch
      %52 = sbr.rel (0) target = $region21
    $region20: #{tpu_custom_call.1} parent=1 // pred_region
      _
    $region21: #{tpu_custom_call.1} parent=1 // pred_fallthru
      _
    // Predicated region
    $region22: #{tpu_custom_call.1} parent=1 // pred_check
      _
    $region23: #{tpu_custom_call.1} parent=1 // pred_check_branch
      %54 = sbr.rel (0) target = $region25
    $region24: #{tpu_custom_call.1} parent=1 // pred_region
      _
    $region25: #{tpu_custom_call.1} parent=1 // pred_fallthru
      _
    %55 = vsyncpa [#allocation4], 1

</llo_original>
